<compile_context>
chip_gen: v6e
topology: v6e:2x2x1
jax: 0.10.0
libtpu: 0.0.40
codegen_flags: <defaults>
</compile_context>

<pallas_src>
import jax
import jax.numpy as jnp
from jax.experimental import pallas as pl
from jax.experimental.pallas import tpu as pltpu

_LANES = 128
_BLOCK_ROWS = 1024          # rows per grid step in the tiled path (512 KiB per f32 block)
_SMALL_ELEMS = 128 * 1024   # <= this many elements per tensor -> grid-less single-block path


def _elementwise_kernel(x0_ref, x1_ref, x2_ref, x3_ref, x4_ref,
                        add_ref, sub_ref, mul_ref, div_ref, cmp_ref):
    x0 = x0_ref[...]
    x1 = x1_ref[...]
    x2 = x2_ref[...]
    x3 = x3_ref[...]
    x4 = x4_ref[...]

    add_ref[...] = x0 + x1
    sub_ref[...] = x2 - x3
    mul_ref[...] = x1 * x4
    div_ref[...] = x4 / (x2 + jnp.float32(1e-6))
    # Comparison stored as uint8 mask (tiled-path sublane count is a multiple
    # of 32 -> unmasked full-vreg u8 stores); cast to bool in the wrapper.
    cmp_ref[...] = (x0 > x1).astype(jnp.uint8)


def _small_path(slabs, work_shape):
    """Everything fits comfortably in VMEM: single block, no grid, no padding."""
    out_shapes = tuple(jax.ShapeDtypeStruct(work_shape, jnp.float32) for _ in range(4)) + (
        jax.ShapeDtypeStruct(work_shape, jnp.uint8),)
    return pl.pallas_call(
        _elementwise_kernel,
        out_shape=out_shapes,
    )(*slabs)


def _tiled_path(slabs, rows):
    """Large inputs: pipelined 1-D grid over big lane-dense blocks."""
    num_blocks = pl.cdiv(rows, _BLOCK_ROWS)
    blk = pl.BlockSpec((_BLOCK_ROWS, _LANES), lambda i: (i, 0))
    out_shapes = tuple(jax.ShapeDtypeStruct((rows, _LANES), jnp.float32) for _ in range(4)) + (
        jax.ShapeDtypeStruct((rows, _LANES), jnp.uint8),)
    return pl.pallas_call(
        _elementwise_kernel,
        out_shape=out_shapes,
        grid=(num_blocks,),
        in_specs=[blk] * 5,
        out_specs=[blk] * 5,
        compiler_params=pltpu.CompilerParams(
            dimension_semantics=("parallel",),
            # ~9.3 MiB of double-buffered blocks; raise the scoped limit so the
            # same block size works on v5e (16 MiB default scoped) / v6e / v7x
            # without retiling. Stays well under v7x's 64 MiB physical VMEM.
            vmem_limit_bytes=32 * 1024 * 1024,
        ),
    )(*slabs)


def pt_module_forward(inputs):
    """inputs: sequence of 5 same-shaped arrays (any shape, e.g. NCHW)."""
    x0, x1, x2, x3, x4 = (jnp.asarray(x, dtype=jnp.float32) for x in inputs)
    orig_shape = x0.shape
    n = x0.size

    if n <= _SMALL_ELEMS:
        # Lane-dense 2-D view when possible; reshape of a contiguous array is
        # a free metadata change, no extra HBM pass.
        work_shape = (n // _LANES, _LANES) if n % _LANES == 0 else (1, n)
        slabs = [x.reshape(work_shape) for x in (x0, x1, x2, x3, x4)]
        add_s, sub_s, mul_s, div_s, cmp_s = _small_path(slabs, work_shape)
        pad = 0
    else:
        # Only pad the ragged tail to a lane multiple (no full-tile padding);
        # Pallas masks the partial last grid block in the row dimension.
        pad = (-n) % _LANES
        rows = (n + pad) // _LANES

        def to_slab(x):
            xf = x.reshape(-1)
            if pad:
                xf = jnp.pad(xf, (0, pad))
            return xf.reshape(rows, _LANES)

        slabs = [to_slab(x) for x in (x0, x1, x2, x3, x4)]
        add_s, sub_s, mul_s, div_s, cmp_s = _tiled_path(slabs, rows)

    def from_slab(s, dtype):
        if pad:
            s = s.reshape(-1)[:n]
        out = s.reshape(orig_shape)
        return out if out.dtype == dtype else out.astype(dtype)

    add_result = from_slab(add_s, jnp.float32)
    sub_result = from_slab(sub_s, jnp.float32)
    mul_result = from_slab(mul_s, jnp.float32)
    div_result = from_slab(div_s, jnp.float32)
    comparison_result = from_slab(cmp_s, jnp.bool_)

    return add_result, sub_result, mul_result, div_result, comparison_result


def _check(inputs, outs):
    x0, x1, x2, x3, x4 = inputs
    refs = (x0 + x1, x2 - x3, x1 * x4, x4 / (x2 + 1e-6), x0 > x1)
    for got, ref in zip(outs, refs):
        assert got.shape == ref.shape and got.dtype == ref.dtype
        if got.dtype == jnp.bool_:
            assert bool(jnp.all(got == ref))
        else:
            assert bool(jnp.allclose(got, ref, rtol=1e-5, atol=1e-5))


if __name__ == "__main__":
    key = jax.random.PRNGKey(0)

    # Small NCHW case (matches the PyTorch module's typical conv-style input)
    # -> exercises the grid-less single-block path.
    keys = jax.random.split(key, 5)
    shape_small = (2, 4, 16, 16)
    inputs_small = [jax.random.normal(k, shape_small, dtype=jnp.float32) for k in keys]
    outs_small = jax.block_until_ready(pt_module_forward(inputs_small))
    _check(inputs_small, outs_small)

    # Larger case -> exercises the tiled / pipelined big-block path.
    keys2 = jax.random.split(jax.random.PRNGKey(1), 5)
    shape_big = (2, 8, 128, 128)   # 262144 elements -> 2048 rows, 2 grid steps
    inputs_big = [jax.random.normal(k, shape_big, dtype=jnp.float32) for k in keys2]
    outs_big = jax.block_until_ready(pt_module_forward(inputs_big))
    _check(inputs_big, outs_big)

    # Ragged case (size not a multiple of 128*1024 rows, not lane-aligned)
    # -> exercises tail padding + partial last grid block masking.
    keys3 = jax.random.split(jax.random.PRNGKey(2), 5)
    shape_ragged = (3, 5, 97, 131)  # 190605 elements
    inputs_ragged = [jax.random.normal(k, shape_ragged, dtype=jnp.float32) for k in keys3]
    outs_ragged = jax.block_until_ready(pt_module_forward(inputs_ragged))
    _check(inputs_ragged, outs_ragged)

    print("KERNEL_OK")
</pallas_src>

<mosaic_0001>
module attributes {stable_mosaic.version = 11 : i64} {
  func.func @_elementwise_kernel(%arg0: memref<16x128xf32, #tpu.memory_space<vmem>>, %arg1: memref<16x128xf32, #tpu.memory_space<vmem>>, %arg2: memref<16x128xf32, #tpu.memory_space<vmem>>, %arg3: memref<16x128xf32, #tpu.memory_space<vmem>>, %arg4: memref<16x128xf32, #tpu.memory_space<vmem>>, %arg5: memref<16x128xf32, #tpu.memory_space<vmem>>, %arg6: memref<16x128xf32, #tpu.memory_space<vmem>>, %arg7: memref<16x128xf32, #tpu.memory_space<vmem>>, %arg8: memref<16x128xf32, #tpu.memory_space<vmem>>, %arg9: memref<16x128xi8, #tpu.memory_space<vmem>>) attributes {dimension_semantics = [], scalar_prefetch = 0 : i64, scratch_operands = 0 : i64, tpu.core_type = #tpu.core_type<tc>} {
    %c0 = arith.constant 0 : index
    %c0_0 = arith.constant 0 : index
    %0 = vector.load %arg0[%c0, %c0_0] : memref<16x128xf32, #tpu.memory_space<vmem>>, vector<16x128xf32>
    %c0_1 = arith.constant 0 : index
    %c0_2 = arith.constant 0 : index
    %1 = vector.load %arg1[%c0_1, %c0_2] : memref<16x128xf32, #tpu.memory_space<vmem>>, vector<16x128xf32>
    %c0_3 = arith.constant 0 : index
    %c0_4 = arith.constant 0 : index
    %2 = vector.load %arg2[%c0_3, %c0_4] : memref<16x128xf32, #tpu.memory_space<vmem>>, vector<16x128xf32>
    %c0_5 = arith.constant 0 : index
    %c0_6 = arith.constant 0 : index
    %3 = vector.load %arg3[%c0_5, %c0_6] : memref<16x128xf32, #tpu.memory_space<vmem>>, vector<16x128xf32>
    %c0_7 = arith.constant 0 : index
    %c0_8 = arith.constant 0 : index
    %4 = vector.load %arg4[%c0_7, %c0_8] : memref<16x128xf32, #tpu.memory_space<vmem>>, vector<16x128xf32>
    %5 = arith.addf %0, %1 : vector<16x128xf32>
    %c0_9 = arith.constant 0 : index
    %c0_10 = arith.constant 0 : index
    %6 = vector.load %arg5[%c0_9, %c0_10] : memref<16x128xf32, #tpu.memory_space<vmem>>, vector<16x128xf32>
    tpu.vector_store %arg5[%c0_9, %c0_10], %5 {strides = array<i32>} : memref<16x128xf32, #tpu.memory_space<vmem>>, vector<16x128xf32>,
    %7 = arith.subf %2, %3 : vector<16x128xf32>
    %c0_11 = arith.constant 0 : index
    %c0_12 = arith.constant 0 : index
    %8 = vector.load %arg6[%c0_11, %c0_12] : memref<16x128xf32, #tpu.memory_space<vmem>>, vector<16x128xf32>
    tpu.vector_store %arg6[%c0_11, %c0_12], %7 {strides = array<i32>} : memref<16x128xf32, #tpu.memory_space<vmem>>, vector<16x128xf32>,
    %9 = arith.mulf %1, %4 : vector<16x128xf32>
    %c0_13 = arith.constant 0 : index
    %c0_14 = arith.constant 0 : index
    %10 = vector.load %arg7[%c0_13, %c0_14] : memref<16x128xf32, #tpu.memory_space<vmem>>, vector<16x128xf32>
    tpu.vector_store %arg7[%c0_13, %c0_14], %9 {strides = array<i32>} : memref<16x128xf32, #tpu.memory_space<vmem>>, vector<16x128xf32>,
    %cst = arith.constant 9.99999997E-7 : f32
    %11 = vector.broadcast %cst : f32 to vector<16x128xf32>
    %12 = arith.addf %2, %11 : vector<16x128xf32>
    %13 = arith.divf %4, %12 : vector<16x128xf32>
    %c0_15 = arith.constant 0 : index
    %c0_16 = arith.constant 0 : index
    %14 = vector.load %arg8[%c0_15, %c0_16] : memref<16x128xf32, #tpu.memory_space<vmem>>, vector<16x128xf32>
    tpu.vector_store %arg8[%c0_15, %c0_16], %13 {strides = array<i32>} : memref<16x128xf32, #tpu.memory_space<vmem>>, vector<16x128xf32>,
    %15 = arith.cmpf ogt, %0, %1 : vector<16x128xf32>
    %16 = arith.extui %15 : vector<16x128xi1> to vector<16x128xi8>
    %c0_17 = arith.constant 0 : index
    %c0_18 = arith.constant 0 : index
    %17 = vector.load %arg9[%c0_17, %c0_18] : memref<16x128xi8, #tpu.memory_space<vmem>>, vector<16x128xi8>
    tpu.vector_store %arg9[%c0_17, %c0_18], %16 {strides = array<i32>} : memref<16x128xi8, #tpu.memory_space<vmem>>, vector<16x128xi8>,
    return
  }
}

</mosaic_0001>

<llo_original>
// kernel: tpu_custom_call.1
$region0: #{tpu_custom_call.1}
  #allocation0 [shape = 'u32[]', space=smem, size = 0x4, offset = 0x4, fixed_abs, tag = 'smem constant byte address 0x4 - core index']
  #allocation1 [shape = 'u32[144,128]{1,0:T(1,128)}', space=vmem, size = 0x12000, scoped, tag = 'internal scratch']
  %s0 = inlined_call_operand.hbm [shape: f32[16,128], index: 0, kind: input, shape index: {}]
  %s1 = inlined_call_operand.hbm [shape: f32[16,128], index: 1, kind: input, shape index: {}]
  %s2 = inlined_call_operand.hbm [shape: f32[16,128], index: 2, kind: input, shape index: {}]
  %s3 = inlined_call_operand.hbm [shape: f32[16,128], index: 3, kind: input, shape index: {}]
  %s4 = inlined_call_operand.hbm [shape: f32[16,128], index: 4, kind: input, shape index: {}]
  %s5 = inlined_call_operand.hbm [shape: f32[16,128], index: 5, kind: output, shape index: {0}]
  %s6 = inlined_call_operand.hbm [shape: f32[16,128], index: 6, kind: output, shape index: {1}]
  %s7 = inlined_call_operand.hbm [shape: f32[16,128], index: 7, kind: output, shape index: {2}]
  %s8 = inlined_call_operand.hbm [shape: f32[16,128], index: 8, kind: output, shape index: {3}]
  %s9 = inlined_call_operand.hbm [shape: u8[16,128], index: 9, kind: output, shape index: {4}]
  %10 = xla_tuple %s5, %s6, %s7, %s8, %s9
  %s11 = sld [smem:[#allocation0]]
  $region82: #{tpu_custom_call.1} parent=0
    _
  %s13 = ssub.s32 1, %s11
  %s14 = scalar_select 0, %s13, %s11
  $region1: #{tpu_custom_call.1} parent=0
    #allocation2 [shape = 'u8[8192]{0}', space=vmem, size = 0x2000, scoped, tag = 'input window, operand 0, single buffered']
    #allocation3 [shape = 's32[1]{0}', space=sflag, size = 0x4, scoped, tag = 'scoped memory for tpu_custom_call.1']
    #allocation4 [shape = 's32[1]{0}', space=sflag, size = 0x4, scoped, tag = 'scoped memory for tpu_custom_call.1']
    #allocation5 [shape = 'u8[8192]{0}', space=vmem, size = 0x2000, scoped, tag = 'input window, operand 1, single buffered']
    #allocation6 [shape = 's32[1]{0}', space=sflag, size = 0x4, scoped, tag = 'scoped memory for tpu_custom_call.1']
    #allocation7 [shape = 'u8[8192]{0}', space=vmem, size = 0x2000, scoped, tag = 'input window, operand 2, single buffered']
    #allocation8 [shape = 'u8[8192]{0}', space=vmem, size = 0x2000, scoped, tag = 'input window, operand 3, single buffered']
    #allocation9 [shape = 's32[1]{0}', space=sflag, size = 0x4, scoped, tag = 'scoped memory for tpu_custom_call.1']
    #allocation10 [shape = 'u8[8192]{0}', space=vmem, size = 0x2000, scoped, tag = 'input window, operand 4, single buffered']
    #allocation11 [shape = 'u8[8192]{0}', space=vmem, size = 0x2000, scoped, tag = 'output window, operand 0, single buffered']
    #allocation12 [shape = 'u8[8192]{0}', space=vmem, size = 0x2000, scoped, tag = 'output window, operand 1, single buffered']
    #allocation13 [shape = 's32[1]{0}', space=sflag, size = 0x4, scoped, tag = 'scoped memory for tpu_custom_call.1']
    #allocation14 [shape = 'u8[8192]{0}', space=vmem, size = 0x2000, scoped, tag = 'output window, operand 2, single buffered']
    #allocation15 [shape = 'u8[8192]{0}', space=vmem, size = 0x2000, scoped, tag = 'output window, operand 3, single buffered']
    #allocation16 [shape = 's32[1]{0}', space=sflag, size = 0x4, scoped, tag = 'scoped memory for tpu_custom_call.1']
    #allocation17 [shape = 'u8[2048]{0}', space=vmem, size = 0x800, scoped, tag = 'output window, operand 4, single buffered']
    %15 = vsyncpa [#allocation3], 0
    %16 = vsyncpa [#allocation6], 0
    %17 = vsyncpa [#allocation9], 0
    %18 = vsyncpa [#allocation4], 0
    %19 = vsyncpa [#allocation13], 0
    %20 = vsyncpa [#allocation16], 0
    // Predicated region
    $region2: #{tpu_custom_call.1} parent=1 // pred_check
      _
    $region3: #{tpu_custom_call.1} parent=1 // pred_check_branch
      %22 = sbr.rel (0) target = $region5
    $region4: #{tpu_custom_call.1} parent=1 // pred_region
      %s24 = ssub.s32 256, 256
      %25 = vsyncadd [#allocation3], %s24
      %s26 = sshll.u32 [#allocation2], 4
      %s27 = int_to_ptr.vmem [resolvable:$true] %s26
      %32 = dma.hbm_to_vmem [thread:$0]  %s0, 256, %s27, [#allocation3], 128, 128, 8
    $region5: #{tpu_custom_call.1} parent=1 // pred_fallthru
      _
    // Predicated region
    $region6: #{tpu_custom_call.1} parent=1 // pred_check
      _
    $region7: #{tpu_custom_call.1} parent=1 // pred_check_branch
      %34 = sbr.rel (0) target = $region9
    $region8: #{tpu_custom_call.1} parent=1 // pred_region
      %s36 = ssub.s32 256, 256
      %37 = vsyncadd [#allocation6], %s36
      %s38 = sshll.u32 [#allocation5], 4
      %s39 = int_to_ptr.vmem [resolvable:$true] %s38
      %44 = dma.hbm_to_vmem [thread:$0]  %s1, 256, %s39, [#allocation6], 128, 128, 8
    $region9: #{tpu_custom_call.1} parent=1 // pred_fallthru
      _
    // Predicated region
    $region10: #{tpu_custom_call.1} parent=1 // pred_check
      _
    $region11: #{tpu_custom_call.1} parent=1 // pred_check_branch
      %46 = sbr.rel (0) target = $region13
    $region12: #{tpu_custom_call.1} parent=1 // pred_region
      %s48 = ssub.s32 256, 256
      %49 = vsyncadd [#allocation6], %s48
      %s50 = sshll.u32 [#allocation7], 4
      %s51 = int_to_ptr.vmem [resolvable:$true] %s50
      %56 = dma.hbm_to_vmem [thread:$0]  %s2, 256, %s51, [#allocation6], 128, 128, 8
    $region13: #{tpu_custom_call.1} parent=1 // pred_fallthru
      _
    // Predicated region
    $region14: #{tpu_custom_call.1} parent=1 // pred_check
      _
    $region15: #{tpu_custom_call.1} parent=1 // pred_check_branch
      %58 = sbr.rel (0) target = $region17
    $region16: #{tpu_custom_call.1} parent=1 // pred_region
      %s60 = ssub.s32 256, 256
      %61 = vsyncadd [#allocation9], %s60
      %s62 = sshll.u32 [#allocation8], 4
      %s63 = int_to_ptr.vmem [resolvable:$true] %s62
      %68 = dma.hbm_to_vmem [thread:$0]  %s3, 256, %s63, [#allocation9], 128, 128, 8
    $region17: #{tpu_custom_call.1} parent=1 // pred_fallthru
      _
    // Predicated region
    $region18: #{tpu_custom_call.1} parent=1 // pred_check
      _
    $region19: #{tpu_custom_call.1} parent=1 // pred_check_branch
      %70 = sbr.rel (0) target = $region21
    $region20: #{tpu_custom_call.1} parent=1 // pred_region
      %s72 = ssub.s32 256, 256
      %73 = vsyncadd [#allocation9], %s72
      %s74 = sshll.u32 [#allocation10], 4
      %s75 = int_to_ptr.vmem [resolvable:$true] %s74
      %80 = dma.hbm_to_vmem [thread:$0]  %s4, 256, %s75, [#allocation9], 128, 128, 8
    $region21: #{tpu_custom_call.1} parent=1 // pred_fallthru
      _
    // Predicated region
    $region22: #{tpu_custom_call.1} parent=1 // pred_check
      _
    $region23: #{tpu_custom_call.1} parent=1 // pred_check_branch
      %82 = sbr.rel (0) target = $region25
    $region24: #{tpu_custom_call.1} parent=1 // pred_region
      %83 = dma.done [#allocation3], 256
    $region25: #{tpu_custom_call.1} parent=1 // pred_fallthru
      _
    // Predicated region
    $region26: #{tpu_custom_call.1} parent=1 // pred_check
      _
    $region27: #{tpu_custom_call.1} parent=1 // pred_check_branch
      %85 = sbr.rel (0) target = $region29
    $region28: #{tpu_custom_call.1} parent=1 // pred_region
      %86 = dma.done [#allocation6], 256
    $region29: #{tpu_custom_call.1} parent=1 // pred_fallthru
      _
    // Predicated region
    $region30: #{tpu_custom_call.1} parent=1 // pred_check
      _
    $region31: #{tpu_custom_call.1} parent=1 // pred_check_branch
      %88 = sbr.rel (0) target = $region33
    $region32: #{tpu_custom_call.1} parent=1 // pred_region
      %89 = dma.done [#allocation6], 256
    $region33: #{tpu_custom_call.1} parent=1 // pred_fallthru
      _
    // Predicated region
    $region34: #{tpu_custom_call.1} parent=1 // pred_check
      _
    $region35: #{tpu_custom_call.1} parent=1 // pred_check_branch
      %91 = sbr.rel (0) target = $region37
    $region36: #{tpu_custom_call.1} parent=1 // pred_region
      %92 = dma.done [#allocation9], 256
    $region37: #{tpu_custom_call.1} parent=1 // pred_fallthru
      _
    // Predicated region
    $region38: #{tpu_custom_call.1} parent=1 // pred_check
      _
    $region39: #{tpu_custom_call.1} parent=1 // pred_check_branch
      %94 = sbr.rel (0) target = $region41
    $region40: #{tpu_custom_call.1} parent=1 // pred_region
      %95 = dma.done [#allocation9], 256
    $region41: #{tpu_custom_call.1} parent=1 // pred_fallthru
      _
    %v98 = vld [vmem:[#allocation2] sm:$0xff]
    %v99 = vld [vmem:[#allocation2 + $0x8] sm:$0xff]
    %v100 = vld [vmem:[#allocation5] sm:$0xff]
    %v101 = vld [vmem:[#allocation5 + $0x8] sm:$0xff]
    %v102 = vld [vmem:[#allocation7] sm:$0xff]
    %v103 = vld [vmem:[#allocation7 + $0x8] sm:$0xff]
    %v104 = vld [vmem:[#allocation8] sm:$0xff]
    %v105 = vld [vmem:[#allocation8 + $0x8] sm:$0xff]
    %v106 = vld [vmem:[#allocation10] sm:$0xff]
    %v107 = vld [vmem:[#allocation10 + $0x8] sm:$0xff]
    %v108 = vadd.f32 %v98, %v100
    %v109 = vadd.f32 %v99, %v101
    %110 = vst [vmem:[#allocation11] sm:$0xff] %v108
    %111 = vst [vmem:[#allocation11 + $0x8] sm:$0xff] %v109
    %v112 = vsub.f32 %v102, %v104
    %v113 = vsub.f32 %v103, %v105
    %114 = vst [vmem:[#allocation12] sm:$0xff] %v112
    %115 = vst [vmem:[#allocation12 + $0x8] sm:$0xff] %v113
    %v116 = vmul.f32 %v100, %v106
    %v117 = vmul.f32 %v101, %v107
    %118 = vst [vmem:[#allocation14] sm:$0xff] %v116
    %119 = vst [vmem:[#allocation14 + $0x8] sm:$0xff] %v117
    %v120 = vadd.f32 %v102, 1e-06
    %v121 = vadd.f32 %v103, 1e-06
    %v122 = vrcp.pop %v120
    %v123 = vmul.f32 %v106, %v122
    %v124 = vrcp.pop %v121
    %v125 = vmul.f32 %v107, %v124
    %126 = vst [vmem:[#allocation15] sm:$0xff] %v123
    %127 = vst [vmem:[#allocation15 + $0x8] sm:$0xff] %v125
    %vm128 = vcmp.gt.f32.partialorder %v98, %v100
    %vm129 = vcmp.gt.f32.partialorder %v99, %v101
    %vm130 = vmpackc.low %vm129, %vm128
    %vm131 = vmpackc.even %vm130, %vm130
    %v132 = vsel %vm131, 16843009, 0
    %v133 = vunpack.c.0.s8 %v132
    %v134 = vunpack.c.1.s8 %v132
    %v135 = vpack.c.b16 %v133, %v133
    %v136 = vpack.c.b8 %v135, %v135
    %v137 = vpack.c.b16 %v134, %v134
    %v138 = vpack.c.b8 %v137, %v137
    %139 = vst [vmem:[#allocation17] sm:$0x3] %v136
    %140 = vst [vmem:[#allocation17 + $0x2] sm:$0x3] %v138
    // Predicated region
    $region42: #{tpu_custom_call.1} parent=1 // pred_check
      _
    $region43: #{tpu_custom_call.1} parent=1 // pred_check_branch
      %142 = sbr.rel (0) target = $region45
    $region44: #{tpu_custom_call.1} parent=1 // pred_region
      %s144 = ssub.s32 256, 256
      %145 = vsyncadd [#allocation4], %s144
      %s146 = sshll.u32 [#allocation11], 4
      %s147 = int_to_ptr.vmem [resolvable:$true] %s146
      %152 = dma.vmem_to_hbm [thread:$0]  %s147, 256, %s5, [#allocation4], 128, 128, 8
    $region45: #{tpu_custom_call.1} parent=1 // pred_fallthru
      _
    // Predicated region
    $region46: #{tpu_custom_call.1} parent=1 // pred_check
      _
    $region47: #{tpu_custom_call.1} parent=1 // pred_check_branch
      %154 = sbr.rel (0) target = $region49
    $region48: #{tpu_custom_call.1} parent=1 // pred_region
      %s156 = ssub.s32 256, 256
      %157 = vsyncadd [#allocation13], %s156
      %s158 = sshll.u32 [#allocation12], 4
      %s159 = int_to_ptr.vmem [resolvable:$true] %s158
      %164 = dma.vmem_to_hbm [thread:$0]  %s159, 256, %s6, [#allocation13], 128, 128, 8
    $region49: #{tpu_custom_call.1} parent=1 // pred_fallthru
      _
    // Predicated region
    $region50: #{tpu_custom_call.1} parent=1 // pred_check
      _
    $region51: #{tpu_custom_call.1} parent=1 // pred_check_branch
      %166 = sbr.rel (0) target = $region53
    $region52: #{tpu_custom_call.1} parent=1 // pred_region
      %s168 = ssub.s32 256, 256
      %169 = vsyncadd [#allocation13], %s168
      %s170 = sshll.u32 [#allocation14], 4
      %s171 = int_to_ptr.vmem [resolvable:$true] %s170
      %176 = dma.vmem_to_hbm [thread:$0]  %s171, 256, %s7, [#allocation13], 128, 128, 8
    $region53: #{tpu_custom_call.1} parent=1 // pred_fallthru
      _
    // Predicated region
    $region54: #{tpu_custom_call.1} parent=1 // pred_check
      _
    $region55: #{tpu_custom_call.1} parent=1 // pred_check_branch
      %178 = sbr.rel (0) target = $region57
    $region56: #{tpu_custom_call.1} parent=1 // pred_region
      %s180 = ssub.s32 256, 256
      %181 = vsyncadd [#allocation16], %s180
      %s182 = sshll.u32 [#allocation15], 4
      %s183 = int_to_ptr.vmem [resolvable:$true] %s182
      %188 = dma.vmem_to_hbm [thread:$0]  %s183, 256, %s8, [#allocation16], 128, 128, 8
    $region57: #{tpu_custom_call.1} parent=1 // pred_fallthru
      _
    // Predicated region
    $region58: #{tpu_custom_call.1} parent=1 // pred_check
      _
    $region59: #{tpu_custom_call.1} parent=1 // pred_check_branch
      %190 = sbr.rel (0) target = $region61
    $region60: #{tpu_custom_call.1} parent=1 // pred_region
      %s192 = ssub.s32 64, 64
      %193 = vsyncadd [#allocation16], %s192
      %s194 = sshll.u32 [#allocation17], 4
      %s195 = int_to_ptr.vmem [resolvable:$true] %s194
      %200 = dma.vmem_to_hbm [thread:$0]  %s195, 64, %s9, [#allocation16], 32, 32, 2
    $region61: #{tpu_custom_call.1} parent=1 // pred_fallthru
      _
    // Predicated region
    $region62: #{tpu_custom_call.1} parent=1 // pred_check
      _
    $region63: #{tpu_custom_call.1} parent=1 // pred_check_branch
      %202 = sbr.rel (0) target = $region65
    $region64: #{tpu_custom_call.1} parent=1 // pred_region
      %203 = dma.done [#allocation4], 256
    $region65: #{tpu_custom_call.1} parent=1 // pred_fallthru
      _
    // Predicated region
    $region66: #{tpu_custom_call.1} parent=1 // pred_check
      _
    $region67: #{tpu_custom_call.1} parent=1 // pred_check_branch
      %205 = sbr.rel (0) target = $region69
    $region68: #{tpu_custom_call.1} parent=1 // pred_region
      %206 = dma.done [#allocation13], 256
    $region69: #{tpu_custom_call.1} parent=1 // pred_fallthru
      _
    // Predicated region
    $region70: #{tpu_custom_call.1} parent=1 // pred_check
      _
    $region71: #{tpu_custom_call.1} parent=1 // pred_check_branch
      %208 = sbr.rel (0) target = $region73
    $region72: #{tpu_custom_call.1} parent=1 // pred_region
      %209 = dma.done [#allocation13], 256
    $region73: #{tpu_custom_call.1} parent=1 // pred_fallthru
      _
    // Predicated region
    $region74: #{tpu_custom_call.1} parent=1 // pred_check
      _
    $region75: #{tpu_custom_call.1} parent=1 // pred_check_branch
      %211 = sbr.rel (0) target = $region77
    $region76: #{tpu_custom_call.1} parent=1 // pred_region
      %212 = dma.done [#allocation16], 256
    $region77: #{tpu_custom_call.1} parent=1 // pred_fallthru
      _
    // Predicated region
    $region78: #{tpu_custom_call.1} parent=1 // pred_check
      _
    $region79: #{tpu_custom_call.1} parent=1 // pred_check_branch
      %214 = sbr.rel (0) target = $region81
    $region80: #{tpu_custom_call.1} parent=1 // pred_region
      %215 = dma.done [#allocation16], 64
    $region81: #{tpu_custom_call.1} parent=1 // pred_fallthru
      _
    %216 = vsyncpa [#allocation3], 1
    %217 = vsyncpa [#allocation6], 1
    %218 = vsyncpa [#allocation9], 1
    %219 = vsyncpa [#allocation4], 1
    %220 = vsyncpa [#allocation13], 1
    %221 = vsyncpa [#allocation16], 1

</llo_original>
